<compile_context>
chip_gen: v7x
topology: tpu7x:2x2x1
jax: 0.10.0
libtpu: 0.0.40
codegen_flags: <defaults>
</compile_context>

<pallas_src>
import jax
import jax.numpy as jnp
from jax import lax
from jax.experimental import pallas as pl
from jax.experimental.pallas import tpu as pltpu

_MAX_TILE_N = 1024   # rows / grid step: ~1 MB of x per step in f32, well under
                     # default scoped VMEM on v5e/v6e/v7x with double-buffering.


def _round_up(v, m):
    return ((v + m - 1) // m) * m


def _choose_tile_n(n):
    if n <= _MAX_TILE_N:
        return _round_up(max(n, 1), 8)
    return _MAX_TILE_N


def _build_pass1(n_pad, tile_n, n_valid, D, K):
    """kl_gaussian for every component of every DP + per-tile column mins."""
    num_tiles = n_pad // tile_n

    def kernel(x_ref, wiv_ref, wmu_ref, q3_ref, klg_ref, kmin_ref):
        x = x_ref[...]                                            # (tile_n, D)
        # quad[n,k] = sum_d inv_var[k,d]*(x[n,d]-mu[k,d])^2, expanded so both
        # contractions are canonical (tile_n, D) @ (D, K) MXU matmuls with the
        # weights pre-transposed in the wrapper (no in-kernel concat/transpose).
        quad = jnp.dot(x * x, wiv_ref[...], preferred_element_type=jnp.float32)
        quad = quad + jnp.dot(x, wmu_ref[...], preferred_element_type=jnp.float32)
        quad = quad + q3_ref[...]                                 # (1, K) broadcast
        # log_pdf + entropy cancels exactly: kl_gaussian = 0.5 * (D - quad)
        klg = 0.5 * (float(D) - quad)                             # (tile_n, K)
        klg_ref[...] = klg
        # Per-tile min over rows (padding rows excluded); wrapper finishes the
        # min over tiles and over the T components of each DP.
        if n_pad != n_valid:
            row = (pl.program_id(0) * tile_n
                   + lax.broadcasted_iota(jnp.int32, (tile_n, K), 0))
            klg = jnp.where(row < n_valid, klg, jnp.finfo(jnp.float32).max)
        kmin_ref[0] = jnp.min(klg, axis=0, keepdims=True)         # (1, K)

    return pl.pallas_call(
        kernel,
        out_shape=(
            jax.ShapeDtypeStruct((n_pad, K), jnp.float32),         # kl_gaussian
            jax.ShapeDtypeStruct((num_tiles, 1, K), jnp.float32),  # per-tile mins
        ),
        grid=(num_tiles,),
        in_specs=[
            pl.BlockSpec((tile_n, D), lambda i: (i, 0)),           # x tile
            pl.BlockSpec((D, K), lambda i: (0, 0)),                # inv_var^T
            pl.BlockSpec((D, K), lambda i: (0, 0)),                # (-2*mu*inv_var)^T
            pl.BlockSpec((1, K), lambda i: (0, 0)),                # sum_d mu^2*inv_var
        ],
        out_specs=(
            pl.BlockSpec((tile_n, K), lambda i: (i, 0)),
            pl.BlockSpec((1, 1, K), lambda i: (i, 0, 0)),
        ),
        compiler_params=pltpu.CompilerParams(
            dimension_semantics=("parallel",)),
    )


def _build_pass2(n_pad, tile_n, n_valid, n_dps, T):
    """Per-DP mix/softmax/likelihood epilogue; emits per-tile partial sums."""
    K = n_dps * T
    num_tiles = n_pad // tile_n

    def kernel(mix_ref, klg_ref, lpi_ref, lik_ref, logphi_ref):
        mixr = mix_ref[...]                                       # (1, K)
        klg = klg_ref[...]                                        # (tile_n, K)
        lpi = lpi_ref[...]                                        # (tile_n, K)
        mk = mixr * klg                                           # mix * kl_gaussian
        kl = mk + (1.0 - mixr) * lpi                              # fused over all DPs
        if n_pad != n_valid:
            row = (pl.program_id(0) * tile_n
                   + lax.broadcasted_iota(jnp.int32, (tile_n, 1), 0))
            valid = row < n_valid                                 # (tile_n, 1)
        else:
            valid = None
        lik_cols = []
        for d in range(n_dps):            # tiny static loop over T-wide lane groups
            sl = slice(d * T, (d + 1) * T)
            kl_d = kl[:, sl]
            mk_d = mk[:, sl]
            # softmax over the T axis (torch dim=1)
            m = jnp.max(kl_d, axis=1, keepdims=True)
            e = jnp.exp(kl_d - m)
            s = jnp.sum(e, axis=1, keepdims=True)
            # DP.forward value: -(phi * mix*kl_gaussian).sum(1).mean(0);
            # emit per-tile partial row-sums, wrapper does -sum/N.
            per_n = jnp.sum(e * mk_d, axis=1, keepdims=True) / s   # (tile_n, 1)
            if valid is not None:
                per_n = jnp.where(valid, per_n, 0.0)
            lik_cols.append(jnp.sum(per_n, axis=0, keepdims=True))  # (1, 1)
            # HDP.get_phi needs sum_T log(phi) = sum_T kl - T * logsumexp_T(kl)
            logphi_ref[:, d:d + 1] = (jnp.sum(kl_d, axis=1, keepdims=True)
                                      - float(T) * (m + jnp.log(s)))
        lik_ref[0] = jnp.concatenate(lik_cols, axis=1)            # (1, n_dps)

    return pl.pallas_call(
        kernel,
        out_shape=(
            jax.ShapeDtypeStruct((num_tiles, 1, n_dps), jnp.float32),  # lik partials
            jax.ShapeDtypeStruct((n_pad, n_dps), jnp.float32),         # sum_T log(phi)
        ),
        grid=(num_tiles,),
        in_specs=[
            pl.BlockSpec((1, K), lambda i: (0, 0)),                # per-DP mix row
            pl.BlockSpec((tile_n, K), lambda i: (i, 0)),           # kl_gaussian tile
            pl.BlockSpec((tile_n, K), lambda i: (i, 0)),           # log_pi tile
        ],
        out_specs=(
            pl.BlockSpec((1, 1, n_dps), lambda i: (i, 0, 0)),
            pl.BlockSpec((tile_n, n_dps), lambda i: (i, 0)),
        ),
        compiler_params=pltpu.CompilerParams(
            dimension_semantics=("parallel",)),
    )


def mix_weights(beta):
    """Stick-breaking weights; any leading dims, matches torch mix_weights."""
    beta1m_cumprod = jnp.cumprod(1.0 - beta, axis=-1)
    pad_lead = [(0, 0)] * (beta.ndim - 1)
    pi = (jnp.pad(beta, pad_lead + [(0, 1)], constant_values=1.0)
          * jnp.pad(beta1m_cumprod, pad_lead + [(1, 0)], constant_values=1.0))
    return pi


def hdp_forward(x, mu, rho, eta, key):
    """HierarchicalDirichletProcess_EM.forward -> (scalar loss, hierarchy phi)."""
    n_dps, T, D = mu.shape
    N = x.shape[-2]
    K = n_dps * T
    x = x.reshape(N, D).astype(jnp.float32)
    mu = mu.astype(jnp.float32)
    rho = rho.astype(jnp.float32)

    k_dp, k_h = jax.random.split(key)

    # Per-DP Beta(1, eta) stick-breaking samples -> log_pi, (N, n_dps*T) layout.
    beta_dp = jax.random.beta(k_dp, 1.0, eta, shape=(n_dps, N, T)).astype(jnp.float32)
    log_pi = jnp.log(mix_weights(beta_dp)[..., :-1])               # (n_dps, N, T)
    lpi_min = jnp.min(log_pi, axis=(1, 2))                         # (n_dps,) global min
    log_pi_flat = jnp.transpose(log_pi, (1, 0, 2)).reshape(N, K)   # shares klg layout

    # Parameter-only math hoisted out of the tiled kernels (feedback item).
    inv_var = jnp.exp(-2.0 * rho)                                  # std = exp(rho)
    wiv_T = inv_var.reshape(K, D).T.astype(jnp.float32)            # (D, K)
    wmu_T = (-2.0 * mu * inv_var).reshape(K, D).T.astype(jnp.float32)
    q3 = jnp.sum(mu * mu * inv_var, axis=-1).reshape(1, K).astype(jnp.float32)

    # Tiling over the bag dimension N (pad + in-kernel row masking if needed).
    tile_n = _choose_tile_n(N)
    n_pad = _round_up(N, tile_n)
    if n_pad != N:
        x_p = jnp.pad(x, ((0, n_pad - N), (0, 0)))
        lpi_p = jnp.pad(log_pi_flat, ((0, n_pad - N), (0, 0)))
    else:
        x_p, lpi_p = x, log_pi_flat

    # Pass 1: fused Gaussian quadratic + per-tile column mins.
    klg, kmin = _build_pass1(n_pad, tile_n, N, D, K)(x_p, wiv_T, wmu_T, q3)
    klg_min = jnp.min(kmin.reshape(-1, K), axis=0).reshape(n_dps, T).min(axis=1)

    # DirichletProcess_EM.get_phi mix scalar (global over the bag, per DP).
    mix = lpi_min / (klg_min + lpi_min)                            # (n_dps,)
    mix_row = jnp.repeat(mix, T).reshape(1, K).astype(jnp.float32)

    # Pass 2: per-DP softmax / likelihood epilogue with per-tile partials.
    lik_part, logphi_p = _build_pass2(n_pad, tile_n, N, n_dps, T)(mix_row, klg, lpi_p)
    likelihoods = -jnp.sum(lik_part.reshape(-1, n_dps), axis=0) / float(N)  # (n_dps,)
    logphi_sum = logphi_p[:N]                                      # (N, n_dps)

    # Hierarchy-level Beta(1, eta) samples -> pi (N, n_dps).
    beta_h = jax.random.beta(k_h, 1.0, eta, shape=(N, n_dps)).astype(jnp.float32)
    pi_h = mix_weights(beta_h)[:, :-1]                             # (N, n_dps)

    # loss = -(pi * likelihoods).mean(0).sum()
    loss = -jnp.sum(jnp.mean(pi_h * likelihoods[None, :], axis=0))

    # HDP.get_phi (state only in torch; returned for completeness).
    phi_h = jax.nn.softmax(jnp.log(pi_h) + logphi_sum, axis=-1)
    return loss, phi_h


if __name__ == "__main__":
    key = jax.random.PRNGKey(0)
    n_dps, trunc, dim = 3, 4, 256   # module default dim=256
    N = 8                           # number of instances in the bag (x.shape[-2])
    eta = 5.0

    kx, kmu, krho, kbeta = jax.random.split(key, 4)
    x = jax.random.normal(kx, (N, dim), dtype=jnp.float32)
    # Deterministic parameter init mirroring __init__:
    #   mu ~ U(-0.5, 0.5), rho ~ U(-4, -3), shapes (n_dps, trunc, dim)
    mu = jax.random.uniform(kmu, (n_dps, trunc, dim), minval=-0.5, maxval=0.5,
                            dtype=jnp.float32)
    rho = jax.random.uniform(krho, (n_dps, trunc, dim), minval=-4.0, maxval=-3.0,
                             dtype=jnp.float32)

    fwd = jax.jit(hdp_forward)
    loss, phi_h = fwd(x, mu, rho, eta, kbeta)
    jax.block_until_ready((loss, phi_h))
    print("KERNEL_OK")
</pallas_src>

<mosaic_0001>
module attributes {stable_mosaic.version = 11 : i64} {
  func.func @kernel(%arg0: i32, %arg1: memref<8x256xf32, #tpu.memory_space<vmem>>, %arg2: memref<256x12xf32, #tpu.memory_space<vmem>>, %arg3: memref<256x12xf32, #tpu.memory_space<vmem>>, %arg4: memref<1x12xf32, #tpu.memory_space<vmem>>, %arg5: memref<8x12xf32, #tpu.memory_space<vmem>>, %arg6: memref<1x1x12xf32, #tpu.memory_space<vmem>>) attributes {dimension_semantics = [#tpu.dimension_semantics<parallel>], iteration_bounds = array<i64: 1>, scalar_prefetch = 0 : i64, scratch_operands = 0 : i64, tpu.core_type = #tpu.core_type<tc>, window_params = [{transform_indices = @transform_0, window_bounds = array<i64: 8, 256>}, {pipeline_mode = #tpu.pipeline_mode<synchronous>, transform_indices = @transform_1, window_bounds = array<i64: 256, 12>}, {pipeline_mode = #tpu.pipeline_mode<synchronous>, transform_indices = @transform_2, window_bounds = array<i64: 256, 12>}, {pipeline_mode = #tpu.pipeline_mode<synchronous>, transform_indices = @transform_3, window_bounds = array<i64: 1, 12>}, {transform_indices = @transform_4, window_bounds = array<i64: 8, 12>}, {transform_indices = @transform_5, window_bounds = array<i64: 1, 1, 12>}]} {
    %c0 = arith.constant 0 : index
    %c0_0 = arith.constant 0 : index
    %0 = vector.load %arg1[%c0, %c0_0] : memref<8x256xf32, #tpu.memory_space<vmem>>, vector<8x256xf32>
    %1 = arith.mulf %0, %0 : vector<8x256xf32>
    %c0_1 = arith.constant 0 : index
    %c0_2 = arith.constant 0 : index
    %2 = vector.load %arg2[%c0_1, %c0_2] : memref<256x12xf32, #tpu.memory_space<vmem>>, vector<256x12xf32>
    %cst = arith.constant dense<0.000000e+00> : vector<8x12xf32>
    %3 = tpu.matmul %1, %2, %cst {dimension_numbers = #tpu.dot_dimension_numbers<[1], [0], [0], [1], [0, 0, 1, 1], [], []>} : vector<8x256xf32>, vector<256x12xf32>, vector<8x12xf32> -> vector<8x12xf32>
    %c0_3 = arith.constant 0 : index
    %c0_4 = arith.constant 0 : index
    %4 = vector.load %arg3[%c0_3, %c0_4] : memref<256x12xf32, #tpu.memory_space<vmem>>, vector<256x12xf32>
    %cst_5 = arith.constant dense<0.000000e+00> : vector<8x12xf32>
    %5 = tpu.matmul %0, %4, %cst_5 {dimension_numbers = #tpu.dot_dimension_numbers<[1], [0], [0], [1], [0, 0, 1, 1], [], []>} : vector<8x256xf32>, vector<256x12xf32>, vector<8x12xf32> -> vector<8x12xf32>
    %6 = arith.addf %3, %5 : vector<8x12xf32>
    %c0_6 = arith.constant 0 : index
    %c0_7 = arith.constant 0 : index
    %7 = vector.load %arg4[%c0_6, %c0_7] : memref<1x12xf32, #tpu.memory_space<vmem>>, vector<1x12xf32>
    %8 = vector.broadcast %7 : vector<1x12xf32> to vector<8x12xf32>
    %9 = arith.addf %6, %8 : vector<8x12xf32>
    %cst_8 = arith.constant 2.560000e+02 : f32
    %10 = vector.broadcast %cst_8 : f32 to vector<8x12xf32>
    %11 = arith.subf %10, %9 : vector<8x12xf32>
    %cst_9 = arith.constant 5.000000e-01 : f32
    %12 = vector.broadcast %cst_9 : f32 to vector<8x12xf32>
    %13 = arith.mulf %12, %11 : vector<8x12xf32>
    %c0_10 = arith.constant 0 : index
    %c0_11 = arith.constant 0 : index
    %14 = vector.load %arg5[%c0_10, %c0_11] : memref<8x12xf32, #tpu.memory_space<vmem>>, vector<8x12xf32>
    tpu.vector_store %arg5[%c0_10, %c0_11], %13 {strides = array<i32>} : memref<8x12xf32, #tpu.memory_space<vmem>>, vector<8x12xf32>,
    %cst_12 = arith.constant dense<0x7F800000> : vector<12xf32>
    %15 = vector.multi_reduction <minimumf>, %13, %cst_12 [0] : vector<8x12xf32> to vector<12xf32>
    %16 = vector.shape_cast %15 : vector<12xf32> to vector<1x12xf32>
    %c0_13 = arith.constant 0 : index
    %c0_14 = arith.constant 0 : index
    %c0_15 = arith.constant 0 : index
    %17 = vector.load %arg6[%c0_13, %c0_14, %c0_15] : memref<1x1x12xf32, #tpu.memory_space<vmem>>, vector<1x1x12xf32>
    %18 = vector.shape_cast %17 : vector<1x1x12xf32> to vector<1x12xf32>
    %19 = vector.shape_cast %16 : vector<1x12xf32> to vector<1x1x12xf32>
    tpu.vector_store %arg6[%c0_13, %c0_14, %c0_15], %19 {strides = array<i32>} : memref<1x1x12xf32, #tpu.memory_space<vmem>>, vector<1x1x12xf32>,
    return
  }
  func.func @transform_0(%arg0: i32) -> (i32, i32) {
    %c0_i32 = arith.constant 0 : i32
    %c0_i32_0 = arith.constant 0 : i32
    return %arg0, %c0_i32 : i32, i32
  }
  func.func @transform_1(%arg0: i32) -> (i32, i32) {
    %c0_i32 = arith.constant 0 : i32
    %c0_i32_0 = arith.constant 0 : i32
    %c0_i32_1 = arith.constant 0 : i32
    return %c0_i32, %c0_i32_0 : i32, i32
  }
  func.func @transform_2(%arg0: i32) -> (i32, i32) {
    %c0_i32 = arith.constant 0 : i32
    %c0_i32_0 = arith.constant 0 : i32
    %c0_i32_1 = arith.constant 0 : i32
    return %c0_i32, %c0_i32_0 : i32, i32
  }
  func.func @transform_3(%arg0: i32) -> (i32, i32) {
    %c0_i32 = arith.constant 0 : i32
    %c0_i32_0 = arith.constant 0 : i32
    %c0_i32_1 = arith.constant 0 : i32
    return %c0_i32, %c0_i32_0 : i32, i32
  }
  func.func @transform_4(%arg0: i32) -> (i32, i32) {
    %c0_i32 = arith.constant 0 : i32
    %c0_i32_0 = arith.constant 0 : i32
    return %arg0, %c0_i32 : i32, i32
  }
  func.func @transform_5(%arg0: i32) -> (i32, i32, i32) {
    %c0_i32 = arith.constant 0 : i32
    %c0_i32_0 = arith.constant 0 : i32
    %c0_i32_1 = arith.constant 0 : i32
    return %arg0, %c0_i32, %c0_i32_0 : i32, i32, i32
  }
}

module attributes {stable_mosaic.version = 11 : i64} {
  func.func @kernel(%arg0: i32, %arg1: memref<1x12xf32, #tpu.memory_space<vmem>>, %arg2: memref<8x12xf32, #tpu.memory_space<vmem>>, %arg3: memref<8x12xf32, #tpu.memory_space<vmem>>, %arg4: memref<1x1x3xf32, #tpu.memory_space<vmem>>, %arg5: memref<8x3xf32, #tpu.memory_space<vmem>>) attributes {dimension_semantics = [#tpu.dimension_semantics<parallel>], iteration_bounds = array<i64: 1>, scalar_prefetch = 0 : i64, scratch_operands = 0 : i64, tpu.core_type = #tpu.core_type<tc>, window_params = [{pipeline_mode = #tpu.pipeline_mode<synchronous>, transform_indices = @transform_0, window_bounds = array<i64: 1, 12>}, {transform_indices = @transform_1, window_bounds = array<i64: 8, 12>}, {transform_indices = @transform_2, window_bounds = array<i64: 8, 12>}, {transform_indices = @transform_3, window_bounds = array<i64: 1, 1, 3>}, {transform_indices = @transform_4, window_bounds = array<i64: 8, 3>}]} {
    %c0 = arith.constant 0 : index
    %c0_0 = arith.constant 0 : index
    %0 = vector.load %arg1[%c0, %c0_0] : memref<1x12xf32, #tpu.memory_space<vmem>>, vector<1x12xf32>
    %c0_1 = arith.constant 0 : index
    %c0_2 = arith.constant 0 : index
    %1 = vector.load %arg2[%c0_1, %c0_2] : memref<8x12xf32, #tpu.memory_space<vmem>>, vector<8x12xf32>
    %c0_3 = arith.constant 0 : index
    %c0_4 = arith.constant 0 : index
    %2 = vector.load %arg3[%c0_3, %c0_4] : memref<8x12xf32, #tpu.memory_space<vmem>>, vector<8x12xf32>
    %3 = vector.broadcast %0 : vector<1x12xf32> to vector<8x12xf32>
    %4 = arith.mulf %3, %1 : vector<8x12xf32>
    %cst = arith.constant 1.000000e+00 : f32
    %5 = vector.broadcast %cst : f32 to vector<1x12xf32>
    %6 = arith.subf %5, %0 : vector<1x12xf32>
    %7 = vector.broadcast %6 : vector<1x12xf32> to vector<8x12xf32>
    %8 = arith.mulf %7, %2 : vector<8x12xf32>
    %9 = arith.addf %4, %8 : vector<8x12xf32>
    %10 = vector.extract_strided_slice %9 {offsets = [0, 0], sizes = [8, 4], strides = [1, 1]} : vector<8x12xf32> to vector<8x4xf32>
    %11 = vector.extract_strided_slice %4 {offsets = [0, 0], sizes = [8, 4], strides = [1, 1]} : vector<8x12xf32> to vector<8x4xf32>
    %cst_5 = arith.constant dense<0xFF800000> : vector<8xf32>
    %12 = vector.multi_reduction <maximumf>, %10, %cst_5 [1] : vector<8x4xf32> to vector<8xf32>
    %13 = vector.shape_cast %12 : vector<8xf32> to vector<8x1xf32>
    %14 = vector.broadcast %13 : vector<8x1xf32> to vector<8x4xf32>
    %15 = arith.subf %10, %14 : vector<8x4xf32>
    %16 = math.exp %15 : vector<8x4xf32>
    %cst_6 = arith.constant dense<0.000000e+00> : vector<8xf32>
    %17 = vector.multi_reduction <add>, %16, %cst_6 [1] : vector<8x4xf32> to vector<8xf32>
    %18 = vector.shape_cast %17 : vector<8xf32> to vector<8x1xf32>
    %19 = arith.mulf %16, %11 : vector<8x4xf32>
    %cst_7 = arith.constant dense<0.000000e+00> : vector<8xf32>
    %20 = vector.multi_reduction <add>, %19, %cst_7 [1] : vector<8x4xf32> to vector<8xf32>
    %21 = vector.shape_cast %20 : vector<8xf32> to vector<8x1xf32>
    %22 = arith.divf %21, %18 : vector<8x1xf32>
    %cst_8 = arith.constant dense<0.000000e+00> : vector<1xf32>
    %23 = vector.multi_reduction <add>, %22, %cst_8 [0] : vector<8x1xf32> to vector<1xf32>
    %24 = vector.shape_cast %23 : vector<1xf32> to vector<1x1xf32>
    %cst_9 = arith.constant dense<0.000000e+00> : vector<8xf32>
    %25 = vector.multi_reduction <add>, %10, %cst_9 [1] : vector<8x4xf32> to vector<8xf32>
    %26 = vector.shape_cast %25 : vector<8xf32> to vector<8x1xf32>
    %27 = math.log %18 : vector<8x1xf32>
    %28 = arith.addf %13, %27 : vector<8x1xf32>
    %cst_10 = arith.constant 4.000000e+00 : f32
    %29 = vector.broadcast %cst_10 : f32 to vector<8x1xf32>
    %30 = arith.mulf %29, %28 : vector<8x1xf32>
    %31 = arith.subf %26, %30 : vector<8x1xf32>
    %c0_11 = arith.constant 0 : index
    %c0_12 = arith.constant 0 : index
    %32 = vector.load %arg5[%c0_11, %c0_12] : memref<8x3xf32, #tpu.memory_space<vmem>>, vector<8x1xf32>
    tpu.vector_store %arg5[%c0_11, %c0_12], %31 {strides = array<i32>} : memref<8x3xf32, #tpu.memory_space<vmem>>, vector<8x1xf32>,
    %33 = vector.extract_strided_slice %9 {offsets = [0, 4], sizes = [8, 4], strides = [1, 1]} : vector<8x12xf32> to vector<8x4xf32>
    %34 = vector.extract_strided_slice %4 {offsets = [0, 4], sizes = [8, 4], strides = [1, 1]} : vector<8x12xf32> to vector<8x4xf32>
    %cst_13 = arith.constant dense<0xFF800000> : vector<8xf32>
    %35 = vector.multi_reduction <maximumf>, %33, %cst_13 [1] : vector<8x4xf32> to vector<8xf32>
    %36 = vector.shape_cast %35 : vector<8xf32> to vector<8x1xf32>
    %37 = vector.broadcast %36 : vector<8x1xf32> to vector<8x4xf32>
    %38 = arith.subf %33, %37 : vector<8x4xf32>
    %39 = math.exp %38 : vector<8x4xf32>
    %cst_14 = arith.constant dense<0.000000e+00> : vector<8xf32>
    %40 = vector.multi_reduction <add>, %39, %cst_14 [1] : vector<8x4xf32> to vector<8xf32>
    %41 = vector.shape_cast %40 : vector<8xf32> to vector<8x1xf32>
    %42 = arith.mulf %39, %34 : vector<8x4xf32>
    %cst_15 = arith.constant dense<0.000000e+00> : vector<8xf32>
    %43 = vector.multi_reduction <add>, %42, %cst_15 [1] : vector<8x4xf32> to vector<8xf32>
    %44 = vector.shape_cast %43 : vector<8xf32> to vector<8x1xf32>
    %45 = arith.divf %44, %41 : vector<8x1xf32>
    %cst_16 = arith.constant dense<0.000000e+00> : vector<1xf32>
    %46 = vector.multi_reduction <add>, %45, %cst_16 [0] : vector<8x1xf32> to vector<1xf32>
    %47 = vector.shape_cast %46 : vector<1xf32> to vector<1x1xf32>
    %cst_17 = arith.constant dense<0.000000e+00> : vector<8xf32>
    %48 = vector.multi_reduction <add>, %33, %cst_17 [1] : vector<8x4xf32> to vector<8xf32>
    %49 = vector.shape_cast %48 : vector<8xf32> to vector<8x1xf32>
    %50 = math.log %41 : vector<8x1xf32>
    %51 = arith.addf %36, %50 : vector<8x1xf32>
    %cst_18 = arith.constant 4.000000e+00 : f32
    %52 = vector.broadcast %cst_18 : f32 to vector<8x1xf32>
    %53 = arith.mulf %52, %51 : vector<8x1xf32>
    %54 = arith.subf %49, %53 : vector<8x1xf32>
    %c0_19 = arith.constant 0 : index
    %c1 = arith.constant 1 : index
    %55 = vector.load %arg5[%c0_19, %c1] : memref<8x3xf32, #tpu.memory_space<vmem>>, vector<8x1xf32>
    tpu.vector_store %arg5[%c0_19, %c1], %54 {strides = array<i32>} : memref<8x3xf32, #tpu.memory_space<vmem>>, vector<8x1xf32>,
    %56 = vector.extract_strided_slice %9 {offsets = [0, 8], sizes = [8, 4], strides = [1, 1]} : vector<8x12xf32> to vector<8x4xf32>
    %57 = vector.extract_strided_slice %4 {offsets = [0, 8], sizes = [8, 4], strides = [1, 1]} : vector<8x12xf32> to vector<8x4xf32>
    %cst_20 = arith.constant dense<0xFF800000> : vector<8xf32>
    %58 = vector.multi_reduction <maximumf>, %56, %cst_20 [1] : vector<8x4xf32> to vector<8xf32>
    %59 = vector.shape_cast %58 : vector<8xf32> to vector<8x1xf32>
    %60 = vector.broadcast %59 : vector<8x1xf32> to vector<8x4xf32>
    %61 = arith.subf %56, %60 : vector<8x4xf32>
    %62 = math.exp %61 : vector<8x4xf32>
    %cst_21 = arith.constant dense<0.000000e+00> : vector<8xf32>
    %63 = vector.multi_reduction <add>, %62, %cst_21 [1] : vector<8x4xf32> to vector<8xf32>
    %64 = vector.shape_cast %63 : vector<8xf32> to vector<8x1xf32>
    %65 = arith.mulf %62, %57 : vector<8x4xf32>
    %cst_22 = arith.constant dense<0.000000e+00> : vector<8xf32>
    %66 = vector.multi_reduction <add>, %65, %cst_22 [1] : vector<8x4xf32> to vector<8xf32>
    %67 = vector.shape_cast %66 : vector<8xf32> to vector<8x1xf32>
    %68 = arith.divf %67, %64 : vector<8x1xf32>
    %cst_23 = arith.constant dense<0.000000e+00> : vector<1xf32>
    %69 = vector.multi_reduction <add>, %68, %cst_23 [0] : vector<8x1xf32> to vector<1xf32>
    %70 = vector.shape_cast %69 : vector<1xf32> to vector<1x1xf32>
    %cst_24 = arith.constant dense<0.000000e+00> : vector<8xf32>
    %71 = vector.multi_reduction <add>, %56, %cst_24 [1] : vector<8x4xf32> to vector<8xf32>
    %72 = vector.shape_cast %71 : vector<8xf32> to vector<8x1xf32>
    %73 = math.log %64 : vector<8x1xf32>
    %74 = arith.addf %59, %73 : vector<8x1xf32>
    %cst_25 = arith.constant 4.000000e+00 : f32
    %75 = vector.broadcast %cst_25 : f32 to vector<8x1xf32>
    %76 = arith.mulf %75, %74 : vector<8x1xf32>
    %77 = arith.subf %72, %76 : vector<8x1xf32>
    %c0_26 = arith.constant 0 : index
    %c2 = arith.constant 2 : index
    %78 = vector.load %arg5[%c0_26, %c2] : memref<8x3xf32, #tpu.memory_space<vmem>>, vector<8x1xf32>
    tpu.vector_store %arg5[%c0_26, %c2], %77 {strides = array<i32>} : memref<8x3xf32, #tpu.memory_space<vmem>>, vector<8x1xf32>,
    %79 = tpu.concatenate %24, %47, %70 in 1 : vector<1x1xf32>, vector<1x1xf32>, vector<1x1xf32> -> vector<1x3xf32>
    %c0_27 = arith.constant 0 : index
    %c0_28 = arith.constant 0 : index
    %c0_29 = arith.constant 0 : index
    %80 = vector.load %arg4[%c0_27, %c0_28, %c0_29] : memref<1x1x3xf32, #tpu.memory_space<vmem>>, vector<1x1x3xf32>
    %81 = vector.shape_cast %80 : vector<1x1x3xf32> to vector<1x3xf32>
    %82 = vector.shape_cast %79 : vector<1x3xf32> to vector<1x1x3xf32>
    tpu.vector_store %arg4[%c0_27, %c0_28, %c0_29], %82 {strides = array<i32>} : memref<1x1x3xf32, #tpu.memory_space<vmem>>, vector<1x1x3xf32>,
    return
  }
  func.func @transform_0(%arg0: i32) -> (i32, i32) {
    %c0_i32 = arith.constant 0 : i32
    %c0_i32_0 = arith.constant 0 : i32
    %c0_i32_1 = arith.constant 0 : i32
    return %c0_i32, %c0_i32_0 : i32, i32
  }
  func.func @transform_1(%arg0: i32) -> (i32, i32) {
    %c0_i32 = arith.constant 0 : i32
    %c0_i32_0 = arith.constant 0 : i32
    return %arg0, %c0_i32 : i32, i32
  }
  func.func @transform_2(%arg0: i32) -> (i32, i32) {
    %c0_i32 = arith.constant 0 : i32
    %c0_i32_0 = arith.constant 0 : i32
    return %arg0, %c0_i32 : i32, i32
  }
  func.func @transform_3(%arg0: i32) -> (i32, i32, i32) {
    %c0_i32 = arith.constant 0 : i32
    %c0_i32_0 = arith.constant 0 : i32
    %c0_i32_1 = arith.constant 0 : i32
    return %arg0, %c0_i32, %c0_i32_0 : i32, i32, i32
  }
  func.func @transform_4(%arg0: i32) -> (i32, i32) {
    %c0_i32 = arith.constant 0 : i32
    %c0_i32_0 = arith.constant 0 : i32
    return %arg0, %c0_i32 : i32, i32
  }
}

</mosaic_0001>

<llo_original>
// kernel: hdp_forward.3
$region0: #{hdp_forward.3}
  #allocation0 [shape = 'u32[]', space=smem, size = 0x4, offset = 0x4, fixed_abs, tag = 'smem constant byte address 0x4 - core index']
  #allocation1 [shape = 'u32[144,128]{1,0:T(1,128)}', space=vmem, size = 0x12000, scoped, tag = 'internal scratch']
  %s0 = inlined_call_operand.vmem [shape: f32[1,12], index: 0, kind: input, shape index: {}]
  %s1 = inlined_call_operand.vmem [shape: f32[8,12], index: 1, kind: input, shape index: {}]
  %s2 = inlined_call_operand.vmem [shape: f32[8,12], index: 2, kind: input, shape index: {}]
  %s3 = inlined_call_operand.vmem [shape: f32[1,1,3], index: 3, kind: output, shape index: {0}]
  %s4 = inlined_call_operand.vmem [shape: f32[8,3], index: 4, kind: output, shape index: {1}]
  %5 = xla_tuple %s3, %s4
  %s6 = sld [smem:[#allocation0]]
  $region30: #{hdp_forward.3} parent=0
    _
  %s8 = ssub.s32 1, %s6
  %s9 = scalar_select 0, %s8, %s6
  // Predicated region
  $region2: #{hdp_forward.3} parent=0 // pred_check
    _
  $region3: #{hdp_forward.3} parent=0 // pred_check_branch
    %11 = sbr.rel (0) target = $region5
  $region4: #{hdp_forward.3} parent=0 // pred_region
    _
  $region5: #{hdp_forward.3} parent=0 // pred_fallthru
    _
  // Predicated region
  $region6: #{hdp_forward.3} parent=0 // pred_check
    _
  $region7: #{hdp_forward.3} parent=0 // pred_check_branch
    %13 = sbr.rel (0) target = $region9
  $region8: #{hdp_forward.3} parent=0 // pred_region
    _
  $region9: #{hdp_forward.3} parent=0 // pred_fallthru
    _
  // Predicated region
  $region10: #{hdp_forward.3} parent=0 // pred_check
    _
  $region11: #{hdp_forward.3} parent=0 // pred_check_branch
    %15 = sbr.rel (0) target = $region13
  $region12: #{hdp_forward.3} parent=0 // pred_region
    _
  $region13: #{hdp_forward.3} parent=0 // pred_fallthru
    _
  %v16 = vld [vmem:[%s0] sm:$0x1]
  %v17 = vld [vmem:[%s1] sm:$0xff]
  %v18 = vld [vmem:[%s2] sm:$0xff]
  %v20 = vlaneseq
  %v21 = vshrl.u32 %v20, 7
  %v22 = vsub.s32 0, %v21
  %v23 = vrot.slane %v16, %v22
  %v25 = vmul.f32 %v23, %v17
  %v26 = vsub.f32 1.0, %v16
  %v28 = vlaneseq
  %v29 = vshrl.u32 %v28, 7
  %v30 = vsub.s32 0, %v29
  %v31 = vrot.slane %v26, %v30
  %v33 = vmul.f32 %v31, %v18
  %v34 = vadd.f32 %v25, %v33
  %vm35 = vcmask 31744
  %v36 = vsel %vm35, %v34, -inf
  %37 = vmax.xlane.f32.xlu0 %v36
  %v38 = vpop.xlane.xlu0 %37
  %v39 = vsub.f32 %v34, %v38
  %v40 = vmul.f32 %v39, 1.442695
  %v41 = vpow.pop %v40
  %v42 = vsel %vm35, %v41, 0.0
  %43 = vadd.xlane.f32.xlu0 %v42
  %v44 = vpop.xlane.xlu0 %43
  %v45 = vmul.f32 %v41, %v25
  %v46 = vsel %vm35, %v45, 0.0
  %47 = vadd.xlane.f32.xlu0 %v46
  %v48 = vpop.xlane.xlu0 %47
  %v49 = vrcp.pop %v44
  %v50 = vmul.f32 %v48, %v49
  %v51 = vrot.slane %v50, 4
  %v52 = vadd.f32 %v50, %v51
  %v53 = vrot.slane %v52, 2
  %v54 = vadd.f32 %v52, %v53
  %v55 = vrot.slane %v54, 1
  %v56 = vadd.f32 %v54, %v55
  %v57 = vsel %vm35, %v34, 0.0
  %58 = vadd.xlane.f32.xlu0 %v57
  %v59 = vpop.xlane.xlu0 %58
  %v60 = vlog2.pop %v44
  %v61 = vmul.f32 %v60, 0.6931472
  %v62 = vadd.f32 %v38, %v61
  %v63 = vmul.f32 %v62, 4.0
  %v64 = vsub.f32 %v59, %v63
  %vm65 = vcmask 7168
  %66 = vst.msk [vmem:[%s4] sm:$0xff] %vm65, %v64
  %vm67 = vcmask 64544
  %v68 = vsel %vm67, %v34, -inf
  %69 = vmax.xlane.f32.xlu0 %v68
  %v70 = vpop.xlane.xlu0 %69
  %v71 = vsub.f32 %v34, %v70
  %v72 = vmul.f32 %v71, 1.442695
  %v73 = vpow.pop %v72
  %75 = vrot.lane.b32.xlu0 %v73, 124
  %v76 = vpop.permute.xlu0 %75
  %v78 = vsel %vm35, %v76, 0.0
  %79 = vadd.xlane.f32.xlu0 %v78
  %v80 = vpop.xlane.xlu0 %79
  %v81 = vmul.f32 %v73, %v25
  %83 = vrot.lane.b32.xlu0 %v81, 124
  %v84 = vpop.permute.xlu0 %83
  %v86 = vsel %vm35, %v84, 0.0
  %87 = vadd.xlane.f32.xlu0 %v86
  %v88 = vpop.xlane.xlu0 %87
  %v89 = vrcp.pop %v80
  %v90 = vmul.f32 %v88, %v89
  %v91 = vrot.slane %v90, 4
  %v92 = vadd.f32 %v90, %v91
  %v93 = vrot.slane %v92, 2
  %v94 = vadd.f32 %v92, %v93
  %v95 = vrot.slane %v94, 1
  %v96 = vadd.f32 %v94, %v95
  %98 = vrot.lane.b32.xlu0 %v34, 124
  %v99 = vpop.permute.xlu0 %98
  %v101 = vsel %vm35, %v99, 0.0
  %102 = vadd.xlane.f32.xlu0 %v101
  %v103 = vpop.xlane.xlu0 %102
  %v104 = vlog2.pop %v80
  %v105 = vmul.f32 %v104, 0.6931472
  %v106 = vadd.f32 %v70, %v105
  %v107 = vmul.f32 %v106, 4.0
  %v108 = vsub.f32 %v103, %v107
  %vm109 = vcmask 15368
  %110 = vst.msk [vmem:[%s4] sm:$0xff] %vm109, %v108
  %vm111 = vcmask 97344
  %v112 = vsel %vm111, %v34, -inf
  %113 = vmax.xlane.f32.xlu0 %v112
  %v114 = vpop.xlane.xlu0 %113
  %v115 = vsub.f32 %v34, %v114
  %v116 = vmul.f32 %v115, 1.442695
  %v117 = vpow.pop %v116
  %119 = vrot.lane.b32.xlu0 %v117, 120
  %v120 = vpop.permute.xlu0 %119
  %v122 = vsel %vm35, %v120, 0.0
  %123 = vadd.xlane.f32.xlu0 %v122
  %v124 = vpop.xlane.xlu0 %123
  %v125 = vmul.f32 %v117, %v25
  %127 = vrot.lane.b32.xlu0 %v125, 120
  %v128 = vpop.permute.xlu0 %127
  %v130 = vsel %vm35, %v128, 0.0
  %131 = vadd.xlane.f32.xlu0 %v130
  %v132 = vpop.xlane.xlu0 %131
  %v133 = vrcp.pop %v124
  %v134 = vmul.f32 %v132, %v133
  %v135 = vrot.slane %v134, 4
  %v136 = vadd.f32 %v134, %v135
  %v137 = vrot.slane %v136, 2
  %v138 = vadd.f32 %v136, %v137
  %v139 = vrot.slane %v138, 1
  %v140 = vadd.f32 %v138, %v139
  %141 = vrot.lane.b32.xlu0 %v34, 120
  %v142 = vpop.permute.xlu0 %141
  %v144 = vsel %vm35, %v142, 0.0
  %145 = vadd.xlane.f32.xlu0 %v144
  %v146 = vpop.xlane.xlu0 %145
  %v147 = vlog2.pop %v124
  %v148 = vmul.f32 %v147, 0.6931472
  %v149 = vadd.f32 %v114, %v148
  %v150 = vmul.f32 %v149, 4.0
  %v151 = vsub.f32 %v146, %v150
  %vm152 = vcmask 23568
  %153 = vst.msk [vmem:[%s4] sm:$0xff] %vm152, %v151
  %v154 = vsel %vm65, %v56, %v96
  %vm155 = vcmask 15360
  %v156 = vsel %vm155, %v154, %v140
  %vm157 = vcmask 16384
  %158 = vst.msk [vmem:[%s3] sm:$0x1] %vm157, %v156
  // Predicated region
  $region14: #{hdp_forward.3} parent=0 // pred_check
    _
  $region15: #{hdp_forward.3} parent=0 // pred_check_branch
    %160 = sbr.rel (0) target = $region17
  $region16: #{hdp_forward.3} parent=0 // pred_region
    _
  $region17: #{hdp_forward.3} parent=0 // pred_fallthru
    _
  // Predicated region
  $region18: #{hdp_forward.3} parent=0 // pred_check
    _
  $region19: #{hdp_forward.3} parent=0 // pred_check_branch
    %162 = sbr.rel (0) target = $region21
  $region20: #{hdp_forward.3} parent=0 // pred_region
    _
  $region21: #{hdp_forward.3} parent=0 // pred_fallthru
    _
  // Predicated region
  $region22: #{hdp_forward.3} parent=0 // pred_check
    _
  $region23: #{hdp_forward.3} parent=0 // pred_check_branch
    %164 = sbr.rel (0) target = $region25
  $region24: #{hdp_forward.3} parent=0 // pred_region
    _
  $region25: #{hdp_forward.3} parent=0 // pred_fallthru
    _
  // Predicated region
  $region26: #{hdp_forward.3} parent=0 // pred_check
    _
  $region27: #{hdp_forward.3} parent=0 // pred_check_branch
    %166 = sbr.rel (0) target = $region29
  $region28: #{hdp_forward.3} parent=0 // pred_region
    _
  $region29: #{hdp_forward.3} parent=0 // pred_fallthru
    _

// kernel: hdp_forward.2
$region0: #{hdp_forward.2}
  #allocation0 [shape = 'u32[]', space=smem, size = 0x4, offset = 0x4, fixed_abs, tag = 'smem constant byte address 0x4 - core index']
  #allocation1 [shape = 'u32[144,128]{1,0:T(1,128)}', space=vmem, size = 0x12000, scoped, tag = 'internal scratch']
  %s0 = inlined_call_operand.vmem [shape: f32[8,256], index: 0, kind: input, shape index: {}]
  %s1 = inlined_call_operand.vmem [shape: f32[256,12], index: 1, kind: input, shape index: {}]
  %s2 = inlined_call_operand.vmem [shape: f32[256,12], index: 2, kind: input, shape index: {}]
  %s3 = inlined_call_operand.vmem [shape: f32[1,12], index: 3, kind: input, shape index: {}]
  %s4 = inlined_call_operand.vmem [shape: f32[8,12], index: 4, kind: output, shape index: {0}]
  %s5 = inlined_call_operand.vmem [shape: f32[1,1,12], index: 5, kind: output, shape index: {1}]
  %6 = xla_tuple %s4, %s5
  %s7 = sld [smem:[#allocation0]]
  $region34: #{hdp_forward.2} parent=0
    _
  %s9 = ssub.s32 1, %s7
  %s10 = scalar_select 0, %s9, %s7
  // Predicated region
  $region2: #{hdp_forward.2} parent=0 // pred_check
    _
  $region3: #{hdp_forward.2} parent=0 // pred_check_branch
    %12 = sbr.rel (0) target = $region5
  $region4: #{hdp_forward.2} parent=0 // pred_region
    _
  $region5: #{hdp_forward.2} parent=0 // pred_fallthru
    _
  // Predicated region
  $region6: #{hdp_forward.2} parent=0 // pred_check
    _
  $region7: #{hdp_forward.2} parent=0 // pred_check_branch
    %14 = sbr.rel (0) target = $region9
  $region8: #{hdp_forward.2} parent=0 // pred_region
    _
  $region9: #{hdp_forward.2} parent=0 // pred_fallthru
    _
  // Predicated region
  $region10: #{hdp_forward.2} parent=0 // pred_check
    _
  $region11: #{hdp_forward.2} parent=0 // pred_check_branch
    %16 = sbr.rel (0) target = $region13
  $region12: #{hdp_forward.2} parent=0 // pred_region
    _
  $region13: #{hdp_forward.2} parent=0 // pred_fallthru
    _
  // Predicated region
  $region14: #{hdp_forward.2} parent=0 // pred_check
    _
  $region15: #{hdp_forward.2} parent=0 // pred_check_branch
    %18 = sbr.rel (0) target = $region17
  $region16: #{hdp_forward.2} parent=0 // pred_region
    _
  $region17: #{hdp_forward.2} parent=0 // pred_fallthru
    _
  %v19 = vld [vmem:[%s0] sm:$0xff]
  %v20 = vld [vmem:[%s0 + $0x8] sm:$0xff]
  %v21 = vmul.f32 %v19, %v19
  %v22 = vmul.f32 %v20, %v20
  %v23 = vld [vmem:[%s1] sm:$0xff]
  %v24 = vld [vmem:[%s1 + $0x8] sm:$0xff]
  %v25 = vld [vmem:[%s1 + $0x10] sm:$0xff]
  %v26 = vld [vmem:[%s1 + $0x18] sm:$0xff]
  %v27 = vld [vmem:[%s1 + $0x20] sm:$0xff]
  %v28 = vld [vmem:[%s1 + $0x28] sm:$0xff]
  %v29 = vld [vmem:[%s1 + $0x30] sm:$0xff]
  %v30 = vld [vmem:[%s1 + $0x38] sm:$0xff]
  %v31 = vld [vmem:[%s1 + $0x40] sm:$0xff]
  %v32 = vld [vmem:[%s1 + $0x48] sm:$0xff]
  %v33 = vld [vmem:[%s1 + $0x50] sm:$0xff]
  %v34 = vld [vmem:[%s1 + $0x58] sm:$0xff]
  %v35 = vld [vmem:[%s1 + $0x60] sm:$0xff]
  %v36 = vld [vmem:[%s1 + $0x68] sm:$0xff]
  %v37 = vld [vmem:[%s1 + $0x70] sm:$0xff]
  %v38 = vld [vmem:[%s1 + $0x78] sm:$0xff]
  %v39 = vld [vmem:[%s1 + $0x80] sm:$0xff]
  %v40 = vld [vmem:[%s1 + $0x88] sm:$0xff]
  %v41 = vld [vmem:[%s1 + $0x90] sm:$0xff]
  %v42 = vld [vmem:[%s1 + $0x98] sm:$0xff]
  %v43 = vld [vmem:[%s1 + $0xa0] sm:$0xff]
  %v44 = vld [vmem:[%s1 + $0xa8] sm:$0xff]
  %v45 = vld [vmem:[%s1 + $0xb0] sm:$0xff]
  %v46 = vld [vmem:[%s1 + $0xb8] sm:$0xff]
  %v47 = vld [vmem:[%s1 + $0xc0] sm:$0xff]
  %v48 = vld [vmem:[%s1 + $0xc8] sm:$0xff]
  %v49 = vld [vmem:[%s1 + $0xd0] sm:$0xff]
  %v50 = vld [vmem:[%s1 + $0xd8] sm:$0xff]
  %v51 = vld [vmem:[%s1 + $0xe0] sm:$0xff]
  %v52 = vld [vmem:[%s1 + $0xe8] sm:$0xff]
  %v53 = vld [vmem:[%s1 + $0xf0] sm:$0xff]
  %v54 = vld [vmem:[%s1 + $0xf8] sm:$0xff]
  %v55 = vld [vmem:[%s2] sm:$0xff]
  %v56 = vld [vmem:[%s2 + $0x8] sm:$0xff]
  %v57 = vld [vmem:[%s2 + $0x10] sm:$0xff]
  %v58 = vld [vmem:[%s2 + $0x18] sm:$0xff]
  %v59 = vld [vmem:[%s2 + $0x20] sm:$0xff]
  %v60 = vld [vmem:[%s2 + $0x28] sm:$0xff]
  %v61 = vld [vmem:[%s2 + $0x30] sm:$0xff]
  %v62 = vld [vmem:[%s2 + $0x38] sm:$0xff]
  %v63 = vld [vmem:[%s2 + $0x40] sm:$0xff]
  %v64 = vld [vmem:[%s2 + $0x48] sm:$0xff]
  %v65 = vld [vmem:[%s2 + $0x50] sm:$0xff]
  %v66 = vld [vmem:[%s2 + $0x58] sm:$0xff]
  %v67 = vld [vmem:[%s2 + $0x60] sm:$0xff]
  %v68 = vld [vmem:[%s2 + $0x68] sm:$0xff]
  %v69 = vld [vmem:[%s2 + $0x70] sm:$0xff]
  %v70 = vld [vmem:[%s2 + $0x78] sm:$0xff]
  %v71 = vld [vmem:[%s2 + $0x80] sm:$0xff]
  %v72 = vld [vmem:[%s2 + $0x88] sm:$0xff]
  %v73 = vld [vmem:[%s2 + $0x90] sm:$0xff]
  %v74 = vld [vmem:[%s2 + $0x98] sm:$0xff]
  %v75 = vld [vmem:[%s2 + $0xa0] sm:$0xff]
  %v76 = vld [vmem:[%s2 + $0xa8] sm:$0xff]
  %v77 = vld [vmem:[%s2 + $0xb0] sm:$0xff]
  %v78 = vld [vmem:[%s2 + $0xb8] sm:$0xff]
  %v79 = vld [vmem:[%s2 + $0xc0] sm:$0xff]
  %v80 = vld [vmem:[%s2 + $0xc8] sm:$0xff]
  %v81 = vld [vmem:[%s2 + $0xd0] sm:$0xff]
  %v82 = vld [vmem:[%s2 + $0xd8] sm:$0xff]
  %v83 = vld [vmem:[%s2 + $0xe0] sm:$0xff]
  %v84 = vld [vmem:[%s2 + $0xe8] sm:$0xff]
  %v85 = vld [vmem:[%s2 + $0xf0] sm:$0xff]
  %v86 = vld [vmem:[%s2 + $0xf8] sm:$0xff]
  %87 = vmatprep.subr.mxu0 0.0
  %88 = vmatpush1.msra.mxu0 %v55
  %89 = vmatprep.subr.mxu0 0.0
  %90 = vmatpush1.msra.mxu0 %v56
  %91 = vmatprep.subr.mxu0 0.0
  %92 = vmatpush1.msra.mxu0 %v57
  %93 = vmatprep.subr.mxu0 0.0
  %94 = vmatpush1.msra.mxu0 %v58
  %95 = vmatprep.subr.mxu0 0.0
  %96 = vmatpush1.msra.mxu0 %v59
  %97 = vmatprep.subr.mxu0 0.0
  %98 = vmatpush1.msra.mxu0 %v60
  %99 = vmatprep.subr.mxu0 0.0
  %100 = vmatpush1.msra.mxu0 %v61
  %101 = vmatprep.subr.mxu0 0.0
  %102 = vmatpush1.msra.mxu0 %v62
  %103 = vmatprep.subr.mxu0 0.0
  %104 = vmatpush1.msra.mxu0 %v63
  %105 = vmatprep.subr.mxu0 0.0
  %106 = vmatpush1.msra.mxu0 %v64
  %107 = vmatprep.subr.mxu0 0.0
  %108 = vmatpush1.msra.mxu0 %v65
  %109 = vmatprep.subr.mxu0 0.0
  %110 = vmatpush1.msra.mxu0 %v66
  %111 = vmatprep.subr.mxu0 0.0
  %112 = vmatpush1.msra.mxu0 %v67
  %113 = vmatprep.subr.mxu0 0.0
  %114 = vmatpush1.msra.mxu0 %v68
  %115 = vmatprep.subr.mxu0 0.0
  %116 = vmatpush1.msra.mxu0 %v69
  %117 = vmatprep.subr.mxu0 0.0
  %118 = vmatpush1.msra.mxu0 %v70
  %119 = vmatprep.subr.mxu0 0.0
  %120 = vmatpush1.msra.mxu0 %v71
  %121 = vmatprep.subr.mxu0 0.0
  %122 = vmatpush1.msra.mxu0 %v72
  %123 = vmatprep.subr.mxu0 0.0
  %124 = vmatpush1.msra.mxu0 %v73
  %125 = vmatprep.subr.mxu0 0.0
  %126 = vmatpush1.msra.mxu0 %v74
  %127 = vmatprep.subr.mxu0 0.0
  %128 = vmatpush1.msra.mxu0 %v75
  %129 = vmatprep.subr.mxu0 0.0
  %130 = vmatpush1.msra.mxu0 %v76
  %131 = vmatprep.subr.mxu0 0.0
  %132 = vmatpush1.msra.mxu0 %v77
  %133 = vmatprep.subr.mxu0 0.0
  %134 = vmatpush1.msra.mxu0 %v78
  %135 = vmatprep.subr.mxu0 0.0
  %136 = vmatpush1.msra.mxu0 %v79
  %137 = vmatprep.subr.mxu0 0.0
  %138 = vmatpush1.msra.mxu0 %v80
  %139 = vmatprep.subr.mxu0 0.0
  %140 = vmatpush1.msra.mxu0 %v81
  %141 = vmatprep.subr.mxu0 0.0
  %142 = vmatpush1.msra.mxu0 %v82
  %143 = vmatprep.subr.mxu0 0.0
  %144 = vmatpush1.msra.mxu0 %v83
  %145 = vmatprep.subr.mxu0 0.0
  %146 = vmatpush1.msra.mxu0 %v84
  %147 = vmatprep.subr.mxu0 0.0
  %148 = vmatpush1.msra.mxu0 %v85
  %149 = vmatprep.subr.mxu0 0.0
  %150 = vmatpush1.msra.mxu0 %v86
  %151 = vmatprep.mubr.f32.mxu0 %v20
  %152 = vmatmul.mubr.f32.gmra.mrb[0].mxu0 %v19
  %v153 = vpop.f32.mrb[0].mxu0
  %v154 = vadd.f32 0.0, %v153
  %v155 = vpop.f32.mrb[0].mxu0
  %156 = vdwg.mxu0
  %157 = vmatprep.subr.mxu0 0.0
  %158 = vmatpush1.msra.mxu0 %v23
  %159 = vmatprep.subr.mxu0 0.0
  %160 = vmatpush1.msra.mxu0 %v24
  %161 = vmatprep.subr.mxu0 0.0
  %162 = vmatpush1.msra.mxu0 %v25
  %163 = vmatprep.subr.mxu0 0.0
  %164 = vmatpush1.msra.mxu0 %v26
  %165 = vmatprep.subr.mxu0 0.0
  %166 = vmatpush1.msra.mxu0 %v27
  %167 = vmatprep.subr.mxu0 0.0
  %168 = vmatpush1.msra.mxu0 %v28
  %169 = vmatprep.subr.mxu0 0.0
  %170 = vmatpush1.msra.mxu0 %v29
  %171 = vmatprep.subr.mxu0 0.0
  %172 = vmatpush1.msra.mxu0 %v30
  %173 = vmatprep.subr.mxu0 0.0
  %174 = vmatpush1.msra.mxu0 %v31
  %175 = vmatprep.subr.mxu0 0.0
  %176 = vmatpush1.msra.mxu0 %v32
  %177 = vmatprep.subr.mxu0 0.0
  %178 = vmatpush1.msra.mxu0 %v33
  %179 = vmatprep.subr.mxu0 0.0
  %180 = vmatpush1.msra.mxu0 %v34
  %181 = vmatprep.subr.mxu0 0.0
  %182 = vmatpush1.msra.mxu0 %v35
  %183 = vmatprep.subr.mxu0 0.0
  %184 = vmatpush1.msra.mxu0 %v36
  %185 = vmatprep.subr.mxu0 0.0
  %186 = vmatpush1.msra.mxu0 %v37
  %187 = vmatprep.subr.mxu0 0.0
  %188 = vmatpush1.msra.mxu0 %v38
  %189 = vmatprep.subr.mxu0 0.0
  %190 = vmatpush1.msra.mxu0 %v39
  %191 = vmatprep.subr.mxu0 0.0
  %192 = vmatpush1.msra.mxu0 %v40
  %193 = vmatprep.subr.mxu0 0.0
  %194 = vmatpush1.msra.mxu0 %v41
  %195 = vmatprep.subr.mxu0 0.0
  %196 = vmatpush1.msra.mxu0 %v42
  %197 = vmatprep.subr.mxu0 0.0
  %198 = vmatpush1.msra.mxu0 %v43
  %199 = vmatprep.subr.mxu0 0.0
  %200 = vmatpush1.msra.mxu0 %v44
  %201 = vmatprep.subr.mxu0 0.0
  %202 = vmatpush1.msra.mxu0 %v45
  %203 = vmatprep.subr.mxu0 0.0
  %204 = vmatpush1.msra.mxu0 %v46
  %205 = vmatprep.subr.mxu0 0.0
  %206 = vmatpush1.msra.mxu0 %v47
  %207 = vmatprep.subr.mxu0 0.0
  %208 = vmatpush1.msra.mxu0 %v48
  %209 = vmatprep.subr.mxu0 0.0
  %210 = vmatpush1.msra.mxu0 %v49
  %211 = vmatprep.subr.mxu0 0.0
  %212 = vmatpush1.msra.mxu0 %v50
  %213 = vmatprep.subr.mxu0 0.0
  %214 = vmatpush1.msra.mxu0 %v51
  %215 = vmatprep.subr.mxu0 0.0
  %216 = vmatpush1.msra.mxu0 %v52
  %217 = vmatprep.subr.mxu0 0.0
  %218 = vmatpush1.msra.mxu0 %v53
  %219 = vmatprep.subr.mxu0 0.0
  %220 = vmatpush1.msra.mxu0 %v54
  %221 = vmatprep.mubr.f32.mxu0 %v22
  %222 = vmatmul.mubr.f32.gmra.mrb[0].mxu0 %v21
  %v223 = vpop.f32.mrb[0].mxu0
  %v224 = vadd.f32 %v154, %v223
  %v225 = vpop.f32.mrb[0].mxu0
  %226 = vdwg.mxu0
  %v227 = vld [vmem:[%s3] sm:$0x1]
  %v229 = vlaneseq
  %v230 = vshrl.u32 %v229, 7
  %v231 = vsub.s32 0, %v230
  %v232 = vrot.slane %v227, %v231
  %v234 = vadd.f32 %v224, %v232
  %v235 = vsub.f32 256.0, %v234
  %v236 = vmul.f32 %v235, 0.5
  %vm237 = vcmask 97280
  %238 = vst.msk [vmem:[%s4] sm:$0xff] %vm237, %v236
  %v239 = vsel %vm237, %v236, inf
  %v240 = vrot.slane %v239, 4
  %v241 = vmin.f32 %v239, %v240
  %v242 = vrot.slane %v241, 2
  %v243 = vmin.f32 %v241, %v242
  %v244 = vrot.slane %v243, 1
  %v245 = vmin.f32 %v243, %v244
  %vm246 = vcmask 90112
  %247 = vst.msk [vmem:[%s5] sm:$0x1] %vm246, %v245
  // Predicated region
  $region18: #{hdp_forward.2} parent=0 // pred_check
    _
  $region19: #{hdp_forward.2} parent=0 // pred_check_branch
    %249 = sbr.rel (0) target = $region21
  $region20: #{hdp_forward.2} parent=0 // pred_region
    _
  $region21: #{hdp_forward.2} parent=0 // pred_fallthru
    _
  // Predicated region
  $region22: #{hdp_forward.2} parent=0 // pred_check
    _
  $region23: #{hdp_forward.2} parent=0 // pred_check_branch
    %251 = sbr.rel (0) target = $region25
  $region24: #{hdp_forward.2} parent=0 // pred_region
    _
  $region25: #{hdp_forward.2} parent=0 // pred_fallthru
    _
  // Predicated region
  $region26: #{hdp_forward.2} parent=0 // pred_check
    _
  $region27: #{hdp_forward.2} parent=0 // pred_check_branch
    %253 = sbr.rel (0) target = $region29
  $region28: #{hdp_forward.2} parent=0 // pred_region
    _
  $region29: #{hdp_forward.2} parent=0 // pred_fallthru
    _
  // Predicated region
  $region30: #{hdp_forward.2} parent=0 // pred_check
    _
  $region31: #{hdp_forward.2} parent=0 // pred_check_branch
    %255 = sbr.rel (0) target = $region33
  $region32: #{hdp_forward.2} parent=0 // pred_region
    _
  $region33: #{hdp_forward.2} parent=0 // pred_fallthru
    _

</llo_original>
